<compile_context>
chip_gen: v6e
topology: v6e:2x2x1
jax: 0.10.0
libtpu: 0.0.40
codegen_flags: <defaults>
</compile_context>

<pallas_src>
import functools
from dataclasses import dataclass
from typing import Optional, Tuple

import jax
import jax.numpy as jnp
from jax.experimental import pallas as pl
from jax.experimental.pallas import tpu as pltpu

TEMPERATURE = 4.0
ALPHA = 0.7


# ----------------------------------------------------------------------------
# Fused loss kernel
# ----------------------------------------------------------------------------
def _fused_loss_kernel(
    s_logits_ref, m_logits_ref,          # (tile_b, vocab)  -- gridded
    s_val_ref, m_val_ref,                # (1, n_val)       -- whole
    path_s_ref, path_m_ref, path_w_ref,  # (R, Pn), (R, Pn), (1, Pn)
    sig_c_ref, sig_p_ref, sig_w_ref,     # (1, Sn) x3
    out_ref,                             # SMEM (4,) f32
    kl_acc_ref,                          # VMEM (1, 1) f32 scratch
    *, inv_temp, kl_scale, batch, tile_b, val_inv):
    pid = pl.program_id(0)
    nsteps = pl.num_programs(0)

    @pl.when(pid == 0)
    def _init():
        kl_acc_ref[...] = jnp.zeros_like(kl_acc_ref)

    # ---- temperature-scaled KL (batchmean), accumulated over batch tiles ----
    s = s_logits_ref[...].astype(jnp.float32) * inv_temp
    m = m_logits_ref[...].astype(jnp.float32)
    # nan_to_num(0.0, posinf=1e6, neginf=-1e6): two selects
    m = jnp.where(jnp.isnan(m), 0.0, m)
    m = jnp.where(jnp.isinf(m), jnp.where(m > 0, 1.0e6, -1.0e6), m)
    m = m * inv_temp

    # student log_softmax
    s_shift = s - jnp.max(s, axis=-1, keepdims=True)
    log_p = s_shift - jnp.log(jnp.sum(jnp.exp(s_shift), axis=-1, keepdims=True))

    # mentor log_softmax (analytic) and softmax
    m_shift = m - jnp.max(m, axis=-1, keepdims=True)
    log_q = m_shift - jnp.log(jnp.sum(jnp.exp(m_shift), axis=-1, keepdims=True))
    q = jnp.exp(log_q)

    kl_rows = jnp.sum(q * (log_q - log_p), axis=-1, keepdims=True)  # (tile_b,1)
    row_ids = pid * tile_b + jax.lax.broadcasted_iota(jnp.int32, kl_rows.shape, 0)
    kl_rows = jnp.where(row_ids < batch, kl_rows, 0.0)              # mask pad rows
    # kl_scale = T^2 / batch folded in here (avoids scalar math at finalize)
    kl_acc_ref[...] = kl_acc_ref[...] + jnp.sum(kl_rows) * kl_scale

    # ---- small losses + finalize on the last grid step ----------------------
    @pl.when(pid == nsteps - 1)
    def _finalize():
        out_ref[0] = jnp.sum(kl_acc_ref[...])

        dv = s_val_ref[...].astype(jnp.float32) - m_val_ref[...].astype(jnp.float32)
        out_ref[1] = jnp.sum(dv * dv) * val_inv

        dp = path_s_ref[...].astype(jnp.float32) - path_m_ref[...].astype(jnp.float32)
        out_ref[2] = jnp.sum(dp * dp * path_w_ref[...])

        dsg = sig_c_ref[...].astype(jnp.float32) - sig_p_ref[...].astype(jnp.float32)
        out_ref[3] = jnp.sum(dsg * dsg * sig_w_ref[...])


def _choose_batch_tile(batch, vocab, itemsize, vmem_budget_bytes=8 * 1024 * 1024):
    """Pick a batch-tile so 2 logit inputs x 2 double-buffers stay under budget
    (conservative so the default scoped-VMEM limit is fine on v5e/v6e/v7x)."""
    per_row = 4 * vocab * itemsize
    tb = (vmem_budget_bytes // max(per_row, 1)) // 8 * 8
    tb = max(tb, 8)
    if tb >= batch:
        return batch, 1            # whole-array block (exempt from (8,128) rule)
    n_tiles = -(-batch // tb)
    return tb, n_tiles


def _fused_losses(s_logits, m_logits, s_val, m_val, val_inv,
                  path_s, path_m, path_w, sig_c, sig_p, sig_w, temperature):
    batch, vocab = s_logits.shape
    itemsize = jnp.dtype(s_logits.dtype).itemsize
    tb, nt = _choose_batch_tile(batch, vocab, itemsize)
    if nt * tb != batch:
        pad = nt * tb - batch
        s_logits = jnp.pad(s_logits, ((0, pad), (0, 0)))
        m_logits = jnp.pad(m_logits, ((0, pad), (0, 0)))

    kernel = functools.partial(
        _fused_loss_kernel,
        inv_temp=1.0 / float(temperature),
        kl_scale=float(temperature) ** 2 / float(batch),
        batch=int(batch),
        tile_b=int(tb),
        val_inv=float(val_inv),
    )

    def whole(arr):
        nd = arr.ndim
        return pl.BlockSpec(arr.shape, lambda i, _nd=nd: (0,) * _nd)

    cost = pl.CostEstimate(
        flops=int(12 * batch * vocab),
        transcendentals=int(3 * batch * vocab),
        bytes_accessed=int(2 * batch * vocab * itemsize),
    )

    out = pl.pallas_call(
        kernel,
        out_shape=jax.ShapeDtypeStruct((4,), jnp.float32),
        grid=(nt,),
        in_specs=[
            pl.BlockSpec((tb, vocab), lambda i: (i, 0)),
            pl.BlockSpec((tb, vocab), lambda i: (i, 0)),
            whole(s_val), whole(m_val),
            whole(path_s), whole(path_m), whole(path_w),
            whole(sig_c), whole(sig_p), whole(sig_w),
        ],
        out_specs=pl.BlockSpec(memory_space=pltpu.MemorySpace.SMEM),
        scratch_shapes=[pltpu.VMEM((1, 1), jnp.float32)],
        compiler_params=pltpu.CompilerParams(dimension_semantics=("arbitrary",)),
        cost_estimate=cost,
    )(s_logits, m_logits, s_val, m_val, path_s, path_m, path_w,
      sig_c, sig_p, sig_w)
    return out


# ----------------------------------------------------------------------------
# ActivationSignature (JAX version of the dataclass)
# ----------------------------------------------------------------------------
@dataclass
class ActivationSignature:
    layer_id: int
    pathway_node_ids: Tuple[str, ...]
    neuron_indices: Tuple[int, ...]
    importance_score: float
    activation_pattern: jnp.ndarray
    temporal_dynamics: Optional[jnp.ndarray] = None
    causal_influence: float = 0.0


# ----------------------------------------------------------------------------
# Wrapper-side glue (static Python; one gather per layer instead of per neuron)
# ----------------------------------------------------------------------------
def _extract_activations_for_signature(activations, signature):
    node_ids = signature.pathway_node_ids
    if not node_ids:
        return None
    if isinstance(node_ids, (set, frozenset)):
        node_ids = sorted(node_ids)

    layer_order = []
    per_layer = {}
    for node_id in node_ids:
        try:
            layer_name, idx_str = node_id.rsplit("_", 1)
            neuron_idx = int(idx_str)
        except Exception:
            continue
        layer_acts = activations.get(layer_name)
        if isinstance(layer_acts, (list, tuple)):
            layer_acts = layer_acts[0] if layer_acts else None
        if layer_acts is None or layer_acts.size == 0:
            continue
        if neuron_idx >= layer_acts.shape[-1]:
            continue
        if layer_name not in per_layer:
            per_layer[layer_name] = (layer_acts, [])
            layer_order.append(layer_name)
        per_layer[layer_name][1].append(neuron_idx)

    cols = []
    for layer_name in layer_order:
        layer_acts, idxs = per_layer[layer_name]
        cols.append(jnp.take(layer_acts, jnp.asarray(idxs, jnp.int32), axis=-1))
    if not cols:
        return None
    return jnp.concatenate(cols, axis=-1)


def _build_pathway_inputs(student_activations, mentor_activations, signatures):
    segs = []
    for sig in signatures:
        if sig is None:
            continue
        s = _extract_activations_for_signature(student_activations, sig)
        m = _extract_activations_for_signature(mentor_activations, sig)
        if s is None or m is None or s.size == 0 or s.shape != m.shape:
            continue
        s2 = s.reshape(-1, s.shape[-1]).astype(jnp.float32)
        m2 = m.reshape(-1, m.shape[-1]).astype(jnp.float32)
        segs.append((s2, m2, float(sig.importance_score), int(s.size)))
    if not segs:
        z = jnp.zeros((1, 1), jnp.float32)
        return z, z, jnp.zeros((1, 1), jnp.float32)

    n_valid = len(segs)
    max_rows = max(s2.shape[0] for s2, _, _, _ in segs)
    s_cols, m_cols, w_cols = [], [], []
    for s2, m2, imp, nelem in segs:
        if s2.shape[0] < max_rows:
            pad = ((0, max_rows - s2.shape[0]), (0, 0))
            s2 = jnp.pad(s2, pad)
            m2 = jnp.pad(m2, pad)
        s_cols.append(s2)
        m_cols.append(m2)
        w_cols.append(jnp.full((1, s2.shape[1]), imp / (n_valid * nelem), jnp.float32))
    return (jnp.concatenate(s_cols, axis=-1),
            jnp.concatenate(m_cols, axis=-1),
            jnp.concatenate(w_cols, axis=-1))


def _build_signature_inputs(student_activations, signatures):
    segs = []
    for sig in signatures:
        if sig is None or getattr(sig, "activation_pattern", None) is None:
            continue
        s = _extract_activations_for_signature(student_activations, sig)
        if s is None or s.size == 0:
            continue
        mean_acts = s.mean(axis=0) if s.ndim > 1 else s
        flat = mean_acts.reshape(-1).astype(jnp.float32)
        pattern = jnp.asarray(sig.activation_pattern, jnp.float32).reshape(-1)
        target_dim = int(pattern.shape[0])
        if target_dim == 0:
            continue
        n = flat.shape[0]
        if n >= target_dim:
            compressed = flat[:target_dim]
        else:
            compressed = jnp.zeros((target_dim,), jnp.float32).at[:n].set(flat)
        segs.append((compressed, pattern, float(sig.importance_score), target_dim))
    if not segs:
        z = jnp.zeros((1, 1), jnp.float32)
        return z, z, jnp.zeros((1, 1), jnp.float32)

    n_valid = len(segs)
    c_list, p_list, w_list = [], [], []
    for compressed, pattern, imp, td in segs:
        c_list.append(compressed)
        p_list.append(pattern)
        w_list.append(jnp.full((td,), imp / (n_valid * td), jnp.float32))
    return (jnp.concatenate(c_list)[None, :],
            jnp.concatenate(p_list)[None, :],
            jnp.concatenate(w_list)[None, :])


# ----------------------------------------------------------------------------
# Forward pass (FocusedDistillationLoss.forward)
# ----------------------------------------------------------------------------
def focused_distillation_forward(student_outputs, mentor_outputs,
                                 student_activations, mentor_activations,
                                 critical_signatures, states,
                                 temperature=TEMPERATURE, alpha=ALPHA):
    s_logits = jnp.asarray(student_outputs["primary_logits"])
    m_logits = jnp.asarray(mentor_outputs["policy_logits"])

    if "value" in student_outputs and "value" in mentor_outputs:
        sv = jnp.asarray(student_outputs["value"]).reshape(1, -1)
        mv = jnp.asarray(mentor_outputs["value"]).reshape(1, -1)
        val_inv = 1.0 / float(sv.size)
    else:
        sv = jnp.zeros((1, 1), jnp.float32)
        mv = jnp.zeros((1, 1), jnp.float32)
        val_inv = 0.0

    path_s, path_m, path_w = _build_pathway_inputs(
        student_activations, mentor_activations, critical_signatures)
    sig_c, sig_p, sig_w = _build_signature_inputs(
        student_activations, critical_signatures)

    out = _fused_losses(s_logits, m_logits, sv, mv, val_inv,
                        path_s, path_m, path_w, sig_c, sig_p, sig_w,
                        temperature)

    losses = {
        "policy_distill": out[0],
        "value_distill": out[1],
        "critical_pathway": out[2],
        "signature_match": out[3],
        # TODO(synk): student_aux_sources defaults to [] in __init__ (requires
        # external aux nn.Modules run on `states`); aux loss is exactly 0 here.
        "aux_focused_distill": jnp.float32(0.0),
    }
    losses["total_focused"] = (
        alpha * losses["policy_distill"]
        + (1.0 - alpha) * (0.3 * losses["value_distill"]
                           + 0.4 * losses["critical_pathway"]
                           + 0.2 * losses["signature_match"])
        + losses["aux_focused_distill"]
    )
    return losses


# ----------------------------------------------------------------------------
# Example run
# ----------------------------------------------------------------------------
if __name__ == "__main__":
    key = jax.random.PRNGKey(0)
    ks = jax.random.split(key, 10)

    B, A, D1, D2, S = 4, 16, 32, 64, 8

    student_outputs = {
        "primary_logits": jax.random.normal(ks[0], (B, A), jnp.float32),
        "value": jax.random.normal(ks[1], (B, 1), jnp.float32),
        "features": jax.random.normal(ks[2], (B, D1), jnp.float32),
    }
    mentor_outputs = {
        "policy_logits": jax.random.normal(ks[3], (B, A), jnp.float32),
        "value": jax.random.normal(ks[4], (B, 1), jnp.float32),
    }
    student_activations = {
        "layer1": jax.random.normal(ks[5], (B, D1), jnp.float32),
        "layer2": jax.random.normal(ks[6], (B, D2), jnp.float32),
    }
    mentor_activations = {
        "layer1": jax.random.normal(ks[7], (B, D1), jnp.float32),
        "layer2": jax.random.normal(ks[8], (B, D2), jnp.float32),
    }
    states = jax.random.normal(ks[9], (B, S), jnp.float32)

    critical_signatures = [
        ActivationSignature(
            layer_id=0,
            pathway_node_ids=("layer1_3", "layer1_7", "layer2_10"),
            neuron_indices=(3, 7, 10),
            importance_score=0.8,
            activation_pattern=jnp.arange(3, dtype=jnp.float32) * 0.1,
        ),
        ActivationSignature(
            layer_id=1,
            pathway_node_ids=("layer1_1", "layer2_5"),
            neuron_indices=(1, 5),
            importance_score=0.5,
            activation_pattern=jnp.arange(4, dtype=jnp.float32) * 0.05,  # pads
        ),
    ]

    losses = focused_distillation_forward(
        student_outputs, mentor_outputs,
        student_activations, mentor_activations,
        critical_signatures, states,
    )

    losses = {k: jax.block_until_ready(v) for k, v in losses.items()}
    for k, v in losses.items():
        print(f"{k}: {float(v):.6f}")
    print("KERNEL_OK")
</pallas_src>

<mosaic_0001>
module attributes {stable_mosaic.version = 11 : i64} {
  func.func @_fused_loss_kernel(%arg0: i32, %arg1: memref<4x16xf32, #tpu.memory_space<vmem>>, %arg2: memref<4x16xf32, #tpu.memory_space<vmem>>, %arg3: memref<1x4xf32, #tpu.memory_space<vmem>>, %arg4: memref<1x4xf32, #tpu.memory_space<vmem>>, %arg5: memref<4x5xf32, #tpu.memory_space<vmem>>, %arg6: memref<4x5xf32, #tpu.memory_space<vmem>>, %arg7: memref<1x5xf32, #tpu.memory_space<vmem>>, %arg8: memref<1x7xf32, #tpu.memory_space<vmem>>, %arg9: memref<1x7xf32, #tpu.memory_space<vmem>>, %arg10: memref<1x7xf32, #tpu.memory_space<vmem>>, %arg11: memref<4xf32, #tpu.memory_space<smem>>, %arg12: memref<1x1xf32, #tpu.memory_space<vmem>>) attributes {dimension_semantics = [#tpu.dimension_semantics<arbitrary>], iteration_bounds = array<i64: 1>, scalar_prefetch = 0 : i64, scratch_operands = 1 : i64, tpu.core_type = #tpu.core_type<tc>, window_params = [{transform_indices = @transform_0, window_bounds = array<i64: 4, 16>}, {transform_indices = @transform_1, window_bounds = array<i64: 4, 16>}, {pipeline_mode = #tpu.pipeline_mode<synchronous>, transform_indices = @transform_2, window_bounds = array<i64: 1, 4>}, {pipeline_mode = #tpu.pipeline_mode<synchronous>, transform_indices = @transform_3, window_bounds = array<i64: 1, 4>}, {pipeline_mode = #tpu.pipeline_mode<synchronous>, transform_indices = @transform_4, window_bounds = array<i64: 4, 5>}, {pipeline_mode = #tpu.pipeline_mode<synchronous>, transform_indices = @transform_5, window_bounds = array<i64: 4, 5>}, {pipeline_mode = #tpu.pipeline_mode<synchronous>, transform_indices = @transform_6, window_bounds = array<i64: 1, 5>}, {pipeline_mode = #tpu.pipeline_mode<synchronous>, transform_indices = @transform_7, window_bounds = array<i64: 1, 7>}, {pipeline_mode = #tpu.pipeline_mode<synchronous>, transform_indices = @transform_8, window_bounds = array<i64: 1, 7>}, {pipeline_mode = #tpu.pipeline_mode<synchronous>, transform_indices = @transform_9, window_bounds = array<i64: 1, 7>}, {transform_indices = @transform_10, window_bounds = array<i64: 4>}]} {
    %c0_i32 = arith.constant 0 : i32
    %0 = arith.cmpi eq, %arg0, %c0_i32 : i32
    %1 = arith.extui %0 : i1 to i32
    %c0_i32_0 = arith.constant 0 : i32
    %2 = arith.cmpi ne, %1, %c0_i32_0 : i32
    scf.if %2 {
      %cst_25 = arith.constant 0.000000e+00 : f32
      %66 = vector.broadcast %cst_25 : f32 to vector<1x1xf32>
      %c0_26 = arith.constant 0 : index
      %c0_27 = arith.constant 0 : index
      %67 = vector.load %arg12[%c0_26, %c0_27] : memref<1x1xf32, #tpu.memory_space<vmem>>, vector<1x1xf32>
      tpu.vector_store %arg12[%c0_26, %c0_27], %66 {strides = array<i32>} : memref<1x1xf32, #tpu.memory_space<vmem>>, vector<1x1xf32>,
    } else {
    }
    %c0 = arith.constant 0 : index
    %c0_1 = arith.constant 0 : index
    %3 = vector.load %arg1[%c0, %c0_1] : memref<4x16xf32, #tpu.memory_space<vmem>>, vector<4x16xf32>
    %cst = arith.constant 2.500000e-01 : f32
    %4 = vector.broadcast %cst : f32 to vector<4x16xf32>
    %5 = arith.mulf %3, %4 : vector<4x16xf32>
    %c0_2 = arith.constant 0 : index
    %c0_3 = arith.constant 0 : index
    %6 = vector.load %arg2[%c0_2, %c0_3] : memref<4x16xf32, #tpu.memory_space<vmem>>, vector<4x16xf32>
    %7 = arith.cmpf one, %6, %6 : vector<4x16xf32>
    %cst_4 = arith.constant 0.000000e+00 : f32
    %8 = vector.broadcast %cst_4 : f32 to vector<4x16xf32>
    %9 = arith.select %7, %8, %6 : vector<4x16xi1>, vector<4x16xf32>
    %10 = math.absf %9 : vector<4x16xf32>
    %cst_5 = arith.constant 0x7F800000 : f32
    %11 = vector.broadcast %cst_5 : f32 to vector<4x16xf32>
    %12 = arith.cmpf oeq, %10, %11 : vector<4x16xf32>
    %cst_6 = arith.constant 0.000000e+00 : f32
    %13 = vector.broadcast %cst_6 : f32 to vector<4x16xf32>
    %14 = arith.cmpf ogt, %9, %13 : vector<4x16xf32>
    %cst_7 = arith.constant 1.000000e+06 : f32
    %cst_8 = arith.constant -1.000000e+06 : f32
    %15 = vector.broadcast %cst_7 : f32 to vector<4x16xf32>
    %16 = vector.broadcast %cst_8 : f32 to vector<4x16xf32>
    %17 = arith.select %14, %15, %16 : vector<4x16xi1>, vector<4x16xf32>
    %18 = arith.select %12, %17, %9 : vector<4x16xi1>, vector<4x16xf32>
    %cst_9 = arith.constant 2.500000e-01 : f32
    %19 = vector.broadcast %cst_9 : f32 to vector<4x16xf32>
    %20 = arith.mulf %18, %19 : vector<4x16xf32>
    %cst_10 = arith.constant dense<0xFF800000> : vector<4xf32>
    %21 = vector.multi_reduction <maximumf>, %5, %cst_10 [1] : vector<4x16xf32> to vector<4xf32>
    %22 = vector.shape_cast %21 : vector<4xf32> to vector<4x1xf32>
    %23 = vector.broadcast %22 : vector<4x1xf32> to vector<4x16xf32>
    %24 = arith.subf %5, %23 : vector<4x16xf32>
    %25 = math.exp %24 : vector<4x16xf32>
    %cst_11 = arith.constant dense<0.000000e+00> : vector<4xf32>
    %26 = vector.multi_reduction <add>, %25, %cst_11 [1] : vector<4x16xf32> to vector<4xf32>
    %27 = vector.shape_cast %26 : vector<4xf32> to vector<4x1xf32>
    %28 = math.log %27 : vector<4x1xf32>
    %29 = vector.broadcast %28 : vector<4x1xf32> to vector<4x16xf32>
    %30 = arith.subf %24, %29 : vector<4x16xf32>
    %cst_12 = arith.constant dense<0xFF800000> : vector<4xf32>
    %31 = vector.multi_reduction <maximumf>, %20, %cst_12 [1] : vector<4x16xf32> to vector<4xf32>
    %32 = vector.shape_cast %31 : vector<4xf32> to vector<4x1xf32>
    %33 = vector.broadcast %32 : vector<4x1xf32> to vector<4x16xf32>
    %34 = arith.subf %20, %33 : vector<4x16xf32>
    %35 = math.exp %34 : vector<4x16xf32>
    %cst_13 = arith.constant dense<0.000000e+00> : vector<4xf32>
    %36 = vector.multi_reduction <add>, %35, %cst_13 [1] : vector<4x16xf32> to vector<4xf32>
    %37 = vector.shape_cast %36 : vector<4xf32> to vector<4x1xf32>
    %38 = math.log %37 : vector<4x1xf32>
    %39 = vector.broadcast %38 : vector<4x1xf32> to vector<4x16xf32>
    %40 = arith.subf %34, %39 : vector<4x16xf32>
    %41 = math.exp %40 : vector<4x16xf32>
    %42 = arith.subf %40, %30 : vector<4x16xf32>
    %43 = arith.mulf %41, %42 : vector<4x16xf32>
    %cst_14 = arith.constant dense<0.000000e+00> : vector<4xf32>
    %44 = vector.multi_reduction <add>, %43, %cst_14 [1] : vector<4x16xf32> to vector<4xf32>
    %45 = vector.shape_cast %44 : vector<4xf32> to vector<4x1xf32>
    %c4_i32 = arith.constant 4 : i32
    %46 = arith.muli %arg0, %c4_i32 : i32
    %47 = tpu.iota {dimensions = array<i32: 0>} : vector<4x1xi32>
    %48 = vector.broadcast %46 : i32 to vector<4x1xi32>
    %49 = arith.addi %48, %47 : vector<4x1xi32>
    %c4_i32_15 = arith.constant 4 : i32
    %50 = vector.broadcast %c4_i32_15 : i32 to vector<4x1xi32>
    %51 = arith.cmpi slt, %49, %50 : vector<4x1xi32>
    %cst_16 = arith.constant 0.000000e+00 : f32
    %52 = vector.broadcast %cst_16 : f32 to vector<4x1xf32>
    %53 = arith.select %51, %45, %52 : vector<4x1xi1>, vector<4x1xf32>
    %c0_17 = arith.constant 0 : index
    %c0_18 = arith.constant 0 : index
    %54 = vector.load %arg12[%c0_17, %c0_18] : memref<1x1xf32, #tpu.memory_space<vmem>>, vector<1x1xf32>
    %55 = vector.shape_cast %53 : vector<4x1xf32> to vector<1x4x1xf32>
    %cst_19 = arith.constant dense<0.000000e+00> : vector<1xf32>
    %56 = vector.multi_reduction <add>, %55, %cst_19 [1, 2] : vector<1x4x1xf32> to vector<1xf32>
    %57 = vector.shape_cast %56 : vector<1xf32> to vector<1x1x1xf32>
    %58 = vector.extract %57[0, 0, 0] : f32 from vector<1x1x1xf32>
    %cst_20 = arith.constant 4.000000e+00 : f32
    %59 = arith.mulf %58, %cst_20 : f32
    %60 = vector.broadcast %59 : f32 to vector<1x1xf32>
    %61 = arith.addf %54, %60 : vector<1x1xf32>
    %c0_21 = arith.constant 0 : index
    %c0_22 = arith.constant 0 : index
    %62 = vector.load %arg12[%c0_21, %c0_22] : memref<1x1xf32, #tpu.memory_space<vmem>>, vector<1x1xf32>
    tpu.vector_store %arg12[%c0_21, %c0_22], %61 {strides = array<i32>} : memref<1x1xf32, #tpu.memory_space<vmem>>, vector<1x1xf32>,
    %c0_i32_23 = arith.constant 0 : i32
    %63 = arith.cmpi eq, %arg0, %c0_i32_23 : i32
    %64 = arith.extui %63 : i1 to i32
    %c0_i32_24 = arith.constant 0 : i32
    %65 = arith.cmpi ne, %64, %c0_i32_24 : i32
    scf.if %65 {
      %c0_25 = arith.constant 0 : index
      %c0_26 = arith.constant 0 : index
      %66 = vector.load %arg12[%c0_25, %c0_26] : memref<1x1xf32, #tpu.memory_space<vmem>>, vector<1x1xf32>
      %67 = vector.shape_cast %66 : vector<1x1xf32> to vector<1x1x1xf32>
      %cst_27 = arith.constant dense<0.000000e+00> : vector<1xf32>
      %68 = vector.multi_reduction <add>, %67, %cst_27 [1, 2] : vector<1x1x1xf32> to vector<1xf32>
      %69 = vector.shape_cast %68 : vector<1xf32> to vector<1x1x1xf32>
      %70 = vector.extract %69[0, 0, 0] : f32 from vector<1x1x1xf32>
      %c0_28 = arith.constant 0 : index
      %71 = memref.load %arg11[%c0_28] : memref<4xf32, #tpu.memory_space<smem>>
      memref.store %70, %arg11[%c0_28] : memref<4xf32, #tpu.memory_space<smem>>
      %c0_29 = arith.constant 0 : index
      %c0_30 = arith.constant 0 : index
      %72 = vector.load %arg3[%c0_29, %c0_30] : memref<1x4xf32, #tpu.memory_space<vmem>>, vector<1x4xf32>
      %c0_31 = arith.constant 0 : index
      %c0_32 = arith.constant 0 : index
      %73 = vector.load %arg4[%c0_31, %c0_32] : memref<1x4xf32, #tpu.memory_space<vmem>>, vector<1x4xf32>
      %74 = arith.subf %72, %73 : vector<1x4xf32>
      %75 = arith.mulf %74, %74 : vector<1x4xf32>
      %76 = vector.shape_cast %75 : vector<1x4xf32> to vector<1x1x4xf32>
      %cst_33 = arith.constant dense<0.000000e+00> : vector<1xf32>
      %77 = vector.multi_reduction <add>, %76, %cst_33 [1, 2] : vector<1x1x4xf32> to vector<1xf32>
      %78 = vector.shape_cast %77 : vector<1xf32> to vector<1x1x1xf32>
      %79 = vector.extract %78[0, 0, 0] : f32 from vector<1x1x1xf32>
      %cst_34 = arith.constant 2.500000e-01 : f32
      %80 = arith.mulf %79, %cst_34 : f32
      %c1 = arith.constant 1 : index
      %81 = memref.load %arg11[%c1] : memref<4xf32, #tpu.memory_space<smem>>
      memref.store %80, %arg11[%c1] : memref<4xf32, #tpu.memory_space<smem>>
      %c0_35 = arith.constant 0 : index
      %c0_36 = arith.constant 0 : index
      %82 = vector.load %arg5[%c0_35, %c0_36] : memref<4x5xf32, #tpu.memory_space<vmem>>, vector<4x5xf32>
      %c0_37 = arith.constant 0 : index
      %c0_38 = arith.constant 0 : index
      %83 = vector.load %arg6[%c0_37, %c0_38] : memref<4x5xf32, #tpu.memory_space<vmem>>, vector<4x5xf32>
      %84 = arith.subf %82, %83 : vector<4x5xf32>
      %85 = arith.mulf %84, %84 : vector<4x5xf32>
      %c0_39 = arith.constant 0 : index
      %c0_40 = arith.constant 0 : index
      %86 = vector.load %arg7[%c0_39, %c0_40] : memref<1x5xf32, #tpu.memory_space<vmem>>, vector<1x5xf32>
      %87 = vector.broadcast %86 : vector<1x5xf32> to vector<4x5xf32>
      %88 = arith.mulf %85, %87 : vector<4x5xf32>
      %89 = vector.shape_cast %88 : vector<4x5xf32> to vector<1x4x5xf32>
      %cst_41 = arith.constant dense<0.000000e+00> : vector<1xf32>
      %90 = vector.multi_reduction <add>, %89, %cst_41 [1, 2] : vector<1x4x5xf32> to vector<1xf32>
      %91 = vector.shape_cast %90 : vector<1xf32> to vector<1x1x1xf32>
      %92 = vector.extract %91[0, 0, 0] : f32 from vector<1x1x1xf32>
      %c2 = arith.constant 2 : index
      %93 = memref.load %arg11[%c2] : memref<4xf32, #tpu.memory_space<smem>>
      memref.store %92, %arg11[%c2] : memref<4xf32, #tpu.memory_space<smem>>
      %c0_42 = arith.constant 0 : index
      %c0_43 = arith.constant 0 : index
      %94 = vector.load %arg8[%c0_42, %c0_43] : memref<1x7xf32, #tpu.memory_space<vmem>>, vector<1x7xf32>
      %c0_44 = arith.constant 0 : index
      %c0_45 = arith.constant 0 : index
      %95 = vector.load %arg9[%c0_44, %c0_45] : memref<1x7xf32, #tpu.memory_space<vmem>>, vector<1x7xf32>
      %96 = arith.subf %94, %95 : vector<1x7xf32>
      %97 = arith.mulf %96, %96 : vector<1x7xf32>
      %c0_46 = arith.constant 0 : index
      %c0_47 = arith.constant 0 : index
      %98 = vector.load %arg10[%c0_46, %c0_47] : memref<1x7xf32, #tpu.memory_space<vmem>>, vector<1x7xf32>
      %99 = arith.mulf %97, %98 : vector<1x7xf32>
      %100 = vector.shape_cast %99 : vector<1x7xf32> to vector<1x1x7xf32>
      %cst_48 = arith.constant dense<0.000000e+00> : vector<1xf32>
      %101 = vector.multi_reduction <add>, %100, %cst_48 [1, 2] : vector<1x1x7xf32> to vector<1xf32>
      %102 = vector.shape_cast %101 : vector<1xf32> to vector<1x1x1xf32>
      %103 = vector.extract %102[0, 0, 0] : f32 from vector<1x1x1xf32>
      %c3 = arith.constant 3 : index
      %104 = memref.load %arg11[%c3] : memref<4xf32, #tpu.memory_space<smem>>
      memref.store %103, %arg11[%c3] : memref<4xf32, #tpu.memory_space<smem>>
    } else {
    }
    return
  }
  func.func @transform_0(%arg0: i32) -> (i32, i32) {
    %c0_i32 = arith.constant 0 : i32
    %c0_i32_0 = arith.constant 0 : i32
    return %arg0, %c0_i32 : i32, i32
  }
  func.func @transform_1(%arg0: i32) -> (i32, i32) {
    %c0_i32 = arith.constant 0 : i32
    %c0_i32_0 = arith.constant 0 : i32
    return %arg0, %c0_i32 : i32, i32
  }
  func.func @transform_2(%arg0: i32) -> (i32, i32) {
    %c0_i32 = arith.constant 0 : i32
    %c0_i32_0 = arith.constant 0 : i32
    %c0_i32_1 = arith.constant 0 : i32
    return %c0_i32, %c0_i32_0 : i32, i32
  }
  func.func @transform_3(%arg0: i32) -> (i32, i32) {
    %c0_i32 = arith.constant 0 : i32
    %c0_i32_0 = arith.constant 0 : i32
    %c0_i32_1 = arith.constant 0 : i32
    return %c0_i32, %c0_i32_0 : i32, i32
  }
  func.func @transform_4(%arg0: i32) -> (i32, i32) {
    %c0_i32 = arith.constant 0 : i32
    %c0_i32_0 = arith.constant 0 : i32
    %c0_i32_1 = arith.constant 0 : i32
    return %c0_i32, %c0_i32_0 : i32, i32
  }
  func.func @transform_5(%arg0: i32) -> (i32, i32) {
    %c0_i32 = arith.constant 0 : i32
    %c0_i32_0 = arith.constant 0 : i32
    %c0_i32_1 = arith.constant 0 : i32
    return %c0_i32, %c0_i32_0 : i32, i32
  }
  func.func @transform_6(%arg0: i32) -> (i32, i32) {
    %c0_i32 = arith.constant 0 : i32
    %c0_i32_0 = arith.constant 0 : i32
    %c0_i32_1 = arith.constant 0 : i32
    return %c0_i32, %c0_i32_0 : i32, i32
  }
  func.func @transform_7(%arg0: i32) -> (i32, i32) {
    %c0_i32 = arith.constant 0 : i32
    %c0_i32_0 = arith.constant 0 : i32
    %c0_i32_1 = arith.constant 0 : i32
    return %c0_i32, %c0_i32_0 : i32, i32
  }
  func.func @transform_8(%arg0: i32) -> (i32, i32) {
    %c0_i32 = arith.constant 0 : i32
    %c0_i32_0 = arith.constant 0 : i32
    %c0_i32_1 = arith.constant 0 : i32
    return %c0_i32, %c0_i32_0 : i32, i32
  }
  func.func @transform_9(%arg0: i32) -> (i32, i32) {
    %c0_i32 = arith.constant 0 : i32
    %c0_i32_0 = arith.constant 0 : i32
    %c0_i32_1 = arith.constant 0 : i32
    return %c0_i32, %c0_i32_0 : i32, i32
  }
  func.func @transform_10(%arg0: i32) -> i32 {
    %c0_i32 = arith.constant 0 : i32
    %c0_i32_0 = arith.constant 0 : i32
    return %c0_i32 : i32
  }
}

</mosaic_0001>

<llo_original>
// kernel: tpu_custom_call.1
$region0: #{tpu_custom_call.1}
  #allocation0 [shape = 'u32[]', space=smem, size = 0x4, offset = 0x4, fixed_abs, tag = 'smem constant byte address 0x4 - core index']
  #allocation1 [shape = 'u32[144,128]{1,0:T(1,128)}', space=vmem, size = 0x12000, scoped, tag = 'internal scratch']
  #allocation2 [shape = 'f32[1,1]{1,0:T(1,128)}', space=vmem, size = 0x200, scoped, tag = 'scratch operand']
  %s0 = inlined_call_operand.hbm [shape: f32[4,16], index: 0, kind: input, shape index: {}]
  %s1 = inlined_call_operand.hbm [shape: f32[4,16], index: 1, kind: input, shape index: {}]
  %s2 = inlined_call_operand.vmem [shape: f32[1,4], index: 2, kind: input, shape index: {}]
  %s3 = inlined_call_operand.hbm [shape: f32[1,4], index: 3, kind: input, shape index: {}]
  %s4 = inlined_call_operand.vmem [shape: f32[4,5], index: 4, kind: input, shape index: {}]
  %s5 = inlined_call_operand.vmem [shape: f32[4,5], index: 5, kind: input, shape index: {}]
  %s6 = inlined_call_operand.vmem [shape: f32[1,5], index: 6, kind: input, shape index: {}]
  %s7 = inlined_call_operand.vmem [shape: f32[1,7], index: 7, kind: input, shape index: {}]
  %s8 = inlined_call_operand.vmem [shape: f32[1,7], index: 8, kind: input, shape index: {}]
  %s9 = inlined_call_operand.vmem [shape: f32[1,7], index: 9, kind: input, shape index: {}]
  %s10 = inlined_call_operand.hbm [shape: f32[4], index: 10, kind: output, shape index: {}]
  %s11 = sld [smem:[#allocation0]]
  $region70: #{tpu_custom_call.1} parent=0
    _
  %s13 = ssub.s32 1, %s11
  %s14 = scalar_select 0, %s13, %s11
  $region1: #{tpu_custom_call.1} parent=0
    #allocation3 [shape = 'u8[2048]{0}', space=vmem, size = 0x800, scoped, tag = 'input window, operand 0, single buffered']
    #allocation4 [shape = 's32[1]{0}', space=sflag, size = 0x4, scoped, tag = 'scoped memory for tpu_custom_call.1']
    #allocation5 [shape = 's32[1]{0}', space=sflag, size = 0x4, scoped, tag = 'scoped memory for tpu_custom_call.1']
    #allocation6 [shape = 'u8[2048]{0}', space=vmem, size = 0x800, scoped, tag = 'input window, operand 1, single buffered']
    #allocation7 [shape = 's32[1]{0}', space=sflag, size = 0x4, scoped, tag = 'scoped memory for tpu_custom_call.1']
    #allocation8 [shape = 'u8[512]{0}', space=vmem, size = 0x400, scoped, tag = 'input window, operand 3, single buffered']
    #allocation9 [shape = 'u8[512]{0}', space=smem, size = 0x200, scoped, tag = 'output window, operand 0, single buffered']
    %15 = vsyncpa [#allocation4], 0
    %16 = vsyncpa [#allocation7], 0
    %17 = vsyncpa [#allocation5], 0
    // Predicated region
    $region2: #{tpu_custom_call.1} parent=1 // pred_check
      _
    $region3: #{tpu_custom_call.1} parent=1 // pred_check_branch
      %19 = sbr.rel (0) target = $region5
    $region4: #{tpu_custom_call.1} parent=1 // pred_region
      %s21 = ssub.s32 64, 64
      %22 = vsyncadd [#allocation4], %s21
      %s24 = sshll.u32 [#allocation3], 4
      %s25 = int_to_ptr.vmem [resolvable:$true] %s24
      %27 = dma.hbm_to_vmem [thread:$0]  %s0, 64, %s25, [#allocation4]
    $region5: #{tpu_custom_call.1} parent=1 // pred_fallthru
      _
    // Predicated region
    $region6: #{tpu_custom_call.1} parent=1 // pred_check
      _
    $region7: #{tpu_custom_call.1} parent=1 // pred_check_branch
      %29 = sbr.rel (0) target = $region9
    $region8: #{tpu_custom_call.1} parent=1 // pred_region
      %s31 = ssub.s32 64, 64
      %32 = vsyncadd [#allocation7], %s31
      %s34 = sshll.u32 [#allocation6], 4
      %s35 = int_to_ptr.vmem [resolvable:$true] %s34
      %37 = dma.hbm_to_vmem [thread:$0]  %s1, 64, %s35, [#allocation7]
    $region9: #{tpu_custom_call.1} parent=1 // pred_fallthru
      _
    // Predicated region
    $region10: #{tpu_custom_call.1} parent=1 // pred_check
      _
    $region11: #{tpu_custom_call.1} parent=1 // pred_check_branch
      %39 = sbr.rel (0) target = $region13
    $region12: #{tpu_custom_call.1} parent=1 // pred_region
      _
    $region13: #{tpu_custom_call.1} parent=1 // pred_fallthru
      _
    // Predicated region
    $region14: #{tpu_custom_call.1} parent=1 // pred_check
      _
    $region15: #{tpu_custom_call.1} parent=1 // pred_check_branch
      %41 = sbr.rel (0) target = $region17
    $region16: #{tpu_custom_call.1} parent=1 // pred_region
      %s43 = ssub.s32 16, 16
      %44 = vsyncadd [#allocation7], %s43
      %s46 = sshll.u32 [#allocation8], 4
      %s47 = int_to_ptr.vmem [resolvable:$true] %s46
      %49 = dma.hbm_to_vmem [thread:$0]  %s3, 16, %s47, [#allocation7]
    $region17: #{tpu_custom_call.1} parent=1 // pred_fallthru
      _
    // Predicated region
    $region18: #{tpu_custom_call.1} parent=1 // pred_check
      _
    $region19: #{tpu_custom_call.1} parent=1 // pred_check_branch
      %51 = sbr.rel (0) target = $region21
    $region20: #{tpu_custom_call.1} parent=1 // pred_region
      _
    $region21: #{tpu_custom_call.1} parent=1 // pred_fallthru
      _
    // Predicated region
    $region22: #{tpu_custom_call.1} parent=1 // pred_check
      _
    $region23: #{tpu_custom_call.1} parent=1 // pred_check_branch
      %53 = sbr.rel (0) target = $region25
    $region24: #{tpu_custom_call.1} parent=1 // pred_region
      _
    $region25: #{tpu_custom_call.1} parent=1 // pred_fallthru
      _
    // Predicated region
    $region26: #{tpu_custom_call.1} parent=1 // pred_check
      _
    $region27: #{tpu_custom_call.1} parent=1 // pred_check_branch
      %55 = sbr.rel (0) target = $region29
    $region28: #{tpu_custom_call.1} parent=1 // pred_region
      _
    $region29: #{tpu_custom_call.1} parent=1 // pred_fallthru
      _
    // Predicated region
    $region30: #{tpu_custom_call.1} parent=1 // pred_check
      _
    $region31: #{tpu_custom_call.1} parent=1 // pred_check_branch
      %57 = sbr.rel (0) target = $region33
    $region32: #{tpu_custom_call.1} parent=1 // pred_region
      _
    $region33: #{tpu_custom_call.1} parent=1 // pred_fallthru
      _
    // Predicated region
    $region34: #{tpu_custom_call.1} parent=1 // pred_check
      _
    $region35: #{tpu_custom_call.1} parent=1 // pred_check_branch
      %59 = sbr.rel (0) target = $region37
    $region36: #{tpu_custom_call.1} parent=1 // pred_region
      _
    $region37: #{tpu_custom_call.1} parent=1 // pred_fallthru
      _
    // Predicated region
    $region38: #{tpu_custom_call.1} parent=1 // pred_check
      _
    $region39: #{tpu_custom_call.1} parent=1 // pred_check_branch
      %61 = sbr.rel (0) target = $region41
    $region40: #{tpu_custom_call.1} parent=1 // pred_region
      _
    $region41: #{tpu_custom_call.1} parent=1 // pred_fallthru
      _
    // Predicated region
    $region42: #{tpu_custom_call.1} parent=1 // pred_check
      _
    $region43: #{tpu_custom_call.1} parent=1 // pred_check_branch
      %63 = sbr.rel (0) target = $region45
    $region44: #{tpu_custom_call.1} parent=1 // pred_region
      %64 = dma.done [#allocation4], 64
    $region45: #{tpu_custom_call.1} parent=1 // pred_fallthru
      _
    // Predicated region
    $region46: #{tpu_custom_call.1} parent=1 // pred_check
      _
    $region47: #{tpu_custom_call.1} parent=1 // pred_check_branch
      %66 = sbr.rel (0) target = $region49
    $region48: #{tpu_custom_call.1} parent=1 // pred_region
      %67 = dma.done [#allocation7], 64
    $region49: #{tpu_custom_call.1} parent=1 // pred_fallthru
      _
    // Predicated region
    $region50: #{tpu_custom_call.1} parent=1 // pred_check
      _
    $region51: #{tpu_custom_call.1} parent=1 // pred_check_branch
      %69 = sbr.rel (0) target = $region53
    $region52: #{tpu_custom_call.1} parent=1 // pred_region
      %70 = dma.done [#allocation7], 16
    $region53: #{tpu_custom_call.1} parent=1 // pred_fallthru
      _
    %p71 = scmp.eq.s32.totalorder 0, 0
    // Predicated region
    $region54: #{tpu_custom_call.1} parent=1 // pred_check
      %p72 = pneg %p71
    $region55: #{tpu_custom_call.1} parent=1 // pred_check_branch
      %74 = sbr.rel (%p72) target = $region57
    $region56: #{tpu_custom_call.1} parent=1 // pred_region
      %vm75 = vcmask 0
      %76 = vst.msk [vmem:[#allocation2] sm:$0x1] %vm75, 0.0
    $region57: #{tpu_custom_call.1} parent=1 // pred_fallthru
      _
    %v77 = vld [vmem:[#allocation3] sm:$0xf]
    %v78 = vmul.f32 %v77, 0.25
    %v79 = vld [vmem:[#allocation6] sm:$0xf]
    %vm80 = vcmp.ne.f32.partialorder %v79, %v79
    %v81 = vsel %vm80, 0.0, %v79
    %v82 = vand.u32 2147483647, %v81
    %vm83 = vcmp.eq.f32.partialorder %v82, inf
    %vm84 = vcmp.gt.f32.partialorder %v81, 0.0
    %v85 = vsel %vm84, 1000000.0, -1000000.0
    %v86 = vsel %vm83, %v85, %v81
    %v87 = vmul.f32 %v86, 0.25
    %vm88 = vcmask 125952
    %v89 = vsel %vm88, %v78, -inf
    %90 = vmax.xlane.f32.xlu0 %v89
    %v91 = vpop.xlane.xlu0 %90
    %v92 = vsub.f32 %v78, %v91
    %v93 = vmul.f32 %v92, 1.442695
    %v94 = vpow.pop %v93
    %v95 = vsel %vm88, %v94, 0.0
    %96 = vadd.xlane.f32.xlu0 %v95
    %v97 = vpop.xlane.xlu0 %96
    %v98 = vlog2.pop %v97
    %v99 = vmul.f32 %v98, 0.6931472
    %v100 = vsub.f32 %v92, %v99
    %v101 = vsel %vm88, %v87, -inf
    %102 = vmax.xlane.f32.xlu0 %v101
    %v103 = vpop.xlane.xlu0 %102
    %v104 = vsub.f32 %v87, %v103
    %v105 = vmul.f32 %v104, 1.442695
    %v106 = vpow.pop %v105
    %v107 = vsel %vm88, %v106, 0.0
    %108 = vadd.xlane.f32.xlu0 %v107
    %v109 = vpop.xlane.xlu0 %108
    %v110 = vlog2.pop %v109
    %v111 = vmul.f32 %v110, 0.6931472
    %v112 = vsub.f32 %v104, %v111
    %v113 = vmul.f32 %v112, 1.442695
    %v114 = vpow.pop %v113
    %v115 = vsub.f32 %v112, %v100
    %v116 = vmul.f32 %v114, %v115
    %v117 = vsel %vm88, %v116, 0.0
    %118 = vadd.xlane.f32.xlu0 %v117
    %v119 = vpop.xlane.xlu0 %118
    %s120 = smul.u32 0, 4
    %v121 = vlaneseq
    %v122 = vshrl.u32 %v121, 7
    %v123 = vstv %s120
    %v124 = vadd.s32 %v123, %v122
    %vm125 = vcmp.lt.s32.totalorder %v124, 4
    %v126 = vsel %vm125, %v119, 0.0
    %v127 = vld [vmem:[#allocation2] sm:$0x1]
    %vm128 = vcmask 3072
    %v129 = vsel %vm128, %v126, 0.0
    %130 = vadd.xlane.f32.xlu0 %v129
    %v131 = vpop.xlane.xlu0 %130
    %v132 = vrot.slane %v131, 4
    %v133 = vadd.f32 %v131, %v132
    %v134 = vrot.slane %v133, 2
    %v135 = vadd.f32 %v133, %v134
    %v136 = vrot.slane %v135, 1
    %v137 = vadd.f32 %v135, %v136
    %s138 = vtos %v137
    %s139 = smul.f32 %s138, 4.0
    %v140 = vstv %s139
    %v141 = vadd.f32 %v127, %v140
    %vm142 = vcmask 0
    %143 = vst.msk [vmem:[#allocation2] sm:$0x1] %vm142, %v141
    // Predicated region
    $region58: #{tpu_custom_call.1} parent=1 // pred_check
      %p144 = pneg %p71
    $region59: #{tpu_custom_call.1} parent=1 // pred_check_branch
      %146 = sbr.rel (%p144) target = $region61
    $region60: #{tpu_custom_call.1} parent=1 // pred_region
      %v147 = vld [vmem:[#allocation2] sm:$0x1]
      %v148 = vadd.f32 %v147, 0.0
      %s149 = vtos %v148
      %s150 = scalar_lea.smem [#allocation9], 0
      %151 = sst [smem:[%s150]] %s149
      %v152 = vld [vmem:[%s2] sm:$0x1]
      %v153 = vld [vmem:[#allocation8] sm:$0x1]
      %v154 = vsub.f32 %v152, %v153
      %v155 = vmul.f32 %v154, %v154
      %vm156 = vcmask 24576
      %v157 = vsel %vm156, %v155, 0.0
      %158 = vadd.xlane.f32.xlu0 %v157
      %v159 = vpop.xlane.xlu0 %158
      %v160 = vrot.slane %v159, 4
      %v161 = vadd.f32 %v159, %v160
      %v162 = vrot.slane %v161, 2
      %v163 = vadd.f32 %v161, %v162
      %v164 = vrot.slane %v163, 1
      %v165 = vadd.f32 %v163, %v164
      %s166 = vtos %v165
      %s167 = smul.f32 %s166, 0.25
      %s168 = scalar_lea.smem [#allocation9], 1
      %169 = sst [smem:[%s168]] %s167
      %v170 = vld [vmem:[%s4] sm:$0xf]
      %v171 = vld [vmem:[%s5] sm:$0xf]
      %v172 = vsub.f32 %v170, %v171
      %v173 = vmul.f32 %v172, %v172
      %v174 = vld [vmem:[%s6] sm:$0x1]
      %v176 = vlaneseq
      %v177 = vshrl.u32 %v176, 7
      %v178 = vsub.s32 0, %v177
      %v179 = vrot.slane %v174, %v178
      %v181 = vmul.f32 %v173, %v179
      %vm182 = vcmask 35840
      %v183 = vsel %vm182, %v181, 0.0
      %184 = vadd.xlane.f32.xlu0 %v183
      %v185 = vpop.xlane.xlu0 %184
      %v186 = vrot.slane %v185, 4
      %v187 = vadd.f32 %v185, %v186
      %v188 = vrot.slane %v187, 2
      %v189 = vadd.f32 %v187, %v188
      %v190 = vrot.slane %v189, 1
      %v191 = vadd.f32 %v189, %v190
      %s192 = vtos %v191
      %s193 = scalar_lea.smem [#allocation9], 2
      %194 = sst [smem:[%s193]] %s192
      %v195 = vld [vmem:[%s7] sm:$0x1]
      %v196 = vld [vmem:[%s8] sm:$0x1]
      %v197 = vsub.f32 %v195, %v196
      %v198 = vmul.f32 %v197, %v197
      %v199 = vld [vmem:[%s9] sm:$0x1]
      %v200 = vmul.f32 %v198, %v199
      %vm201 = vcmask 49152
      %v202 = vsel %vm201, %v200, 0.0
      %203 = vadd.xlane.f32.xlu0 %v202
      %v204 = vpop.xlane.xlu0 %203
      %v205 = vrot.slane %v204, 4
      %v206 = vadd.f32 %v204, %v205
      %v207 = vrot.slane %v206, 2
      %v208 = vadd.f32 %v206, %v207
      %v209 = vrot.slane %v208, 1
      %v210 = vadd.f32 %v208, %v209
      %s211 = vtos %v210
      %s212 = scalar_lea.smem [#allocation9], 3
      %213 = sst [smem:[%s212]] %s211
    $region61: #{tpu_custom_call.1} parent=1 // pred_fallthru
      _
    // Predicated region
    $region62: #{tpu_custom_call.1} parent=1 // pred_check
      _
    $region63: #{tpu_custom_call.1} parent=1 // pred_check_branch
      %215 = sbr.rel (0) target = $region65
    $region64: #{tpu_custom_call.1} parent=1 // pred_region
      %s217 = ssub.s32 16, 16
      %218 = vsyncadd [#allocation5], %s217
      %221 = dma.smem_to_hbm [#allocation9], 16, %s10, [#allocation5]
    $region65: #{tpu_custom_call.1} parent=1 // pred_fallthru
      _
    // Predicated region
    $region66: #{tpu_custom_call.1} parent=1 // pred_check
      _
    $region67: #{tpu_custom_call.1} parent=1 // pred_check_branch
      %223 = sbr.rel (0) target = $region69
    $region68: #{tpu_custom_call.1} parent=1 // pred_region
      %224 = dma.done [#allocation5], 16
    $region69: #{tpu_custom_call.1} parent=1 // pred_fallthru
      _
    %225 = sfence
    %226 = vsyncpa [#allocation4], 1
    %227 = vsyncpa [#allocation7], 1
    %228 = vsyncpa [#allocation5], 1

</llo_original>
